<compile_context>
chip_gen: v6e
topology: v6e:2x2x1
jax: 0.10.0
libtpu: 0.0.40
codegen_flags: <defaults>
</compile_context>

<pallas_src>
import functools

import jax
import jax.numpy as jnp
from jax import lax
from jax.experimental import pallas as pl
from jax.experimental.pallas import tpu as pltpu


def _round_up(x, m):
    return (x + m - 1) // m * m


# ----------------------------- roll direction probe -------------------------

def _roll_matches_jnp():
    """One-time check: does pltpu.roll move element i -> i+shift (jnp.roll)?

    The folded conv weights are built for jnp.roll semantics; if the hardware
    rotate goes the other way we simply use the spatially flipped weights, so
    the 3x3 conv is correct under either convention.
    """
    def k(x_ref, o_ref):
        o_ref[...] = pltpu.roll(x_ref[...], shift=1, axis=1)

    x = lax.broadcasted_iota(jnp.float32, (8, 128), 1)
    y = pl.pallas_call(k, out_shape=jax.ShapeDtypeStruct((8, 128), jnp.float32))(x)
    # jnp.roll semantics: y[0, 0] == 127 ; opposite direction: y[0, 0] == 1.
    return y[0, 0] > 64.0


# ----------------------------- kernel helpers ------------------------------

def _group_norm(xm, mask, mavg, gamma, beta):
    """GroupNorm (eps=1e-5, affine) on a (C, P) f32 tile.

    `xm` must be exactly zero outside the valid HxW pixels.  `mavg` is a tiny
    (C, C) constant mapping per-channel sums to per-channel *group* means
    (1/(HW*channels_per_group) folded in; zero rows/cols for padded channels).
    Two-pass variance: var = group-mean of (x - mean)^2 over valid pixels.
    """
    s1 = jnp.sum(xm, axis=1, keepdims=True)                           # (C, 1)
    mean = jnp.dot(mavg, s1, preferred_element_type=jnp.float32)      # (C, 1)
    d = (xm - mean) * mask                                            # (C, P)
    s2 = jnp.sum(d * d, axis=1, keepdims=True)                        # (C, 1)
    var = jnp.dot(mavg, s2, preferred_element_type=jnp.float32)       # (C, 1)
    inv = lax.rsqrt(var + 1e-5)
    return d * (inv * gamma) + beta          # caller applies relu + mask


def _conv3x3(h, w_ref, col_ref, c, W2, P):
    """3x3 'same' conv on the (C, P) lane-major layout.

    im2col along the contraction dim: the 9 tap shifts are lane rotations
    (XLU) stored into an 8-row-aligned (9*c, P) f32 scratch, followed by a
    single (Cout, 9*c) @ (9*c, P) bf16 matmul with f32 accumulation.  Reads
    for valid pixels never wrap (W2 >= W+2 zero guard columns per row); halo
    / tail outputs are junk and are masked or sliced off later.
    """
    t = 0
    for ky in (-1, 0, 1):
        for kx in (-1, 0, 1):
            off = ky * W2 + kx
            shifted = h if off == 0 else pltpu.roll(h, shift=(-off) % P, axis=1)
            col_ref[t * c:(t + 1) * c, :] = shifted
            t += 1
    col = col_ref[0:9 * c, :].astype(jnp.bfloat16)
    return jnp.dot(w_ref[...], col, preferred_element_type=jnp.float32)


def _block_kernel(*refs, W2, P, cin_p, cout_p, has_nin):
    if has_nin:
        (x_ref, proj_ref, mask_ref,
         mavg1_ref, g1_ref, b1_ref, w1_ref, c1b_ref,
         mavg2_ref, g2_ref, b2_ref, w2_ref, c2b_ref,
         ws_ref, bs_ref,
         o_ref, col_ref) = refs
    else:
        (x_ref, proj_ref, mask_ref,
         mavg1_ref, g1_ref, b1_ref, w1_ref, c1b_ref,
         mavg2_ref, g2_ref, b2_ref, w2_ref, c2b_ref,
         o_ref, col_ref) = refs
        ws_ref = bs_ref = None

    x = x_ref[0]                         # (cin_p, P) f32, exact zeros off-grid
    mask = mask_ref[...]                 # (1, P) f32, hoisted constant

    # ---- h1 = relu(norm(inputs)); halo re-zeroed so conv padding stays 0 ----
    h1 = jnp.maximum(
        _group_norm(x, mask, mavg1_ref[...], g1_ref[...], b1_ref[...]), 0.0) * mask

    # ---- conv1 + bias + (wrapper-precomputed) temb projection ----
    h2 = _conv3x3(h1, w1_ref, col_ref, cin_p, W2, P) + c1b_ref[...] + proj_ref[0]

    # ---- relu(norm2(.)); stats restricted to valid pixels via the mask ----
    h2m = h2 * mask
    h3 = jnp.maximum(
        _group_norm(h2m, mask, mavg2_ref[...], g2_ref[...], b2_ref[...]), 0.0) * mask
    # TODO(synk): nn.Dropout is identity here (p=0.0 / eval semantics); RNG dropout omitted.

    # ---- conv2 + bias + shortcut ----
    out = _conv3x3(h3, w2_ref, col_ref, cout_p, W2, P) + c2b_ref[...]
    if has_nin:
        sc = jnp.dot(ws_ref[...], x, preferred_element_type=jnp.float32) + bs_ref[...]
    else:
        sc = x                            # identity shortcut (cin == cout)
    o_ref[0] = out + sc                   # halo/tail lanes are junk; wrapper slices them off


# -------------------------------- wrapper ----------------------------------

def wide_resnet_block(x_nchw, temb, params, num_groups):
    N, cin, H, W = x_nchw.shape
    cout = params["conv1_w"].shape[0]
    f32 = jnp.float32

    cin_p = _round_up(cin, 8)
    cout_p = _round_up(cout, 8)
    cmax = max(cin_p, cout_p)
    W2 = W + 2                               # row stride (>= W+2 zero guard cols)
    P0 = (H + 2) * W2
    P = _round_up(P0, 128)                   # lane-dense, unmasked stores

    # NCHW -> (N, cin_p, P): pad channels + spatial halo, flatten spatial onto
    # lanes, zero tail.  No transpose needed (channel-major already).
    xp = jnp.pad(x_nchw.astype(f32),
                 ((0, 0), (0, cin_p - cin), (1, 1), (1, W2 - W - 1)))
    xf = jnp.pad(xp.reshape(N, cin_p, P0), ((0, 0), (0, 0), (0, P - P0)))

    # Validity mask (1 on real HxW pixels), hoisted out of the kernel.
    pos = jnp.arange(P, dtype=jnp.int32)
    row = pos // W2
    col = pos % W2
    mask = (((row >= 1) & (row <= H) & (col >= 1) & (col <= W))
            .astype(f32).reshape(1, P))

    # temb projection hoisted out of the kernel (one dense XLA matmul).
    proj = (jnp.maximum(temb.astype(f32), 0.0) @ params["temb_w"].T.astype(f32)
            + params["temb_b"].astype(f32))                          # (N, cout)
    proj = jnp.pad(proj, ((0, 0), (0, cout_p - cout))).reshape(N, cout_p, 1)

    # GroupNorm constants: per-channel-sum -> group-mean map with 1/(HW*cg)
    # folded in (tiny (C,C); padded channels get zero rows/cols so they stay 0).
    def group_avg(C, C_p):
        cg = C // num_groups
        idx = jnp.arange(C)
        same = ((idx[:, None] // cg) == (idx[None, :] // cg)).astype(f32)
        return jnp.pad(same / float(H * W * cg), ((0, C_p - C), (0, C_p - C)))

    def col_pad(v, C, C_p):
        return jnp.pad(v.astype(f32).reshape(C, 1), ((0, C_p - C), (0, 0)))

    mavg1 = group_avg(cin, cin_p)
    mavg2 = group_avg(cout, cout_p)
    g1 = col_pad(params["norm_g"], cin, cin_p)
    b1 = col_pad(params["norm_b"], cin, cin_p)
    g2 = col_pad(params["norm2_g"], cout, cout_p)
    b2 = col_pad(params["norm2_b"], cout, cout_p)
    c1b = col_pad(params["conv1_b"], cout, cout_p)
    c2b = col_pad(params["conv2_b"], cout, cout_p)

    # Folded im2col conv weights: (Co, Ci, 3, 3) -> (co_p, 9*ci_p) bf16,
    # taps (ky, kx) row-major with channels fastest; tap order selected by the
    # roll-direction probe so it matches the in-kernel lane rotations.
    roll_fwd = _roll_matches_jnp()

    def fold(w, ci, ci_p, co, co_p):
        wp = jnp.pad(w.astype(f32), ((0, co_p - co), (0, ci_p - ci), (0, 0), (0, 0)))
        return jnp.transpose(wp, (0, 2, 3, 1)).reshape(co_p, 9 * ci_p).astype(jnp.bfloat16)

    def fold_dir(w, ci, ci_p, co, co_p):
        return jnp.where(roll_fwd,
                         fold(w, ci, ci_p, co, co_p),
                         fold(w[:, :, ::-1, ::-1], ci, ci_p, co, co_p))

    w1 = fold_dir(params["conv1_w"], cin, cin_p, cout, cout_p)
    w2 = fold_dir(params["conv2_w"], cout, cout_p, cout, cout_p)

    has_nin = cin != cout

    def const(a):
        return pl.BlockSpec(a.shape, lambda n: (0,) * a.ndim)

    args = [xf, proj, mask, mavg1, g1, b1, w1, c1b, mavg2, g2, b2, w2, c2b]
    in_specs = [
        pl.BlockSpec((1, cin_p, P), lambda n: (n, 0, 0)),
        pl.BlockSpec((1, cout_p, 1), lambda n: (n, 0, 0)),
        const(mask),
        const(mavg1), const(g1), const(b1), const(w1), const(c1b),
        const(mavg2), const(g2), const(b2), const(w2), const(c2b),
    ]
    if has_nin:
        # 1x1-conv shortcut in f32 (matches reference precision).
        ws = jnp.pad(params["nin_w"][:, :, 0, 0].astype(f32),
                     ((0, cout_p - cout), (0, cin_p - cin)))
        bs = col_pad(params["nin_b"], cout, cout_p)
        args += [ws, bs]
        in_specs += [const(ws), const(bs)]

    kernel = functools.partial(_block_kernel, W2=W2, P=P,
                               cin_p=cin_p, cout_p=cout_p, has_nin=has_nin)

    # VMEM budget computed from actual block + scratch sizes (+ headroom for
    # intermediates / relayouts).  NOTE: at production C the constant-index
    # weight inputs should get pipeline_mode=pl.Buffered(1), and for large
    # H*W / single-TC chips multiple images per grid step would amortize the
    # per-step overhead; at these sizes one image per step fits comfortably.
    vmem_limit = int(2 * 4 * P * (cin_p + cout_p)      # double-buffered act blocks
                     + 4 * 9 * cmax * P                # im2col scratch
                     + (8 << 20))                      # headroom

    out_flat = pl.pallas_call(
        kernel,
        out_shape=jax.ShapeDtypeStruct((N, cout_p, P), f32),
        grid=(N,),
        in_specs=in_specs,
        out_specs=pl.BlockSpec((1, cout_p, P), lambda n: (n, 0, 0)),
        scratch_shapes=[pltpu.VMEM((9 * cmax, P), f32)],
        compiler_params=pltpu.CompilerParams(
            dimension_semantics=("parallel",),
            vmem_limit_bytes=vmem_limit),
    )(*args)

    # (N, cout_p, P) -> NCHW: drop padded channels, tail, and halo. No transpose.
    out = out_flat[:, :cout, :P0].reshape(N, cout, H + 2, W2)
    return out[:, :, 1:H + 1, 1:W + 1]


# ------------------------- params & pure-JAX reference ----------------------

def init_params(key, cin, cout, tc):
    ks = jax.random.split(key, 12)

    def rnd(k, shape, scale=0.1):
        return scale * jax.random.normal(k, shape, jnp.float32)

    return dict(
        norm_g=1.0 + rnd(ks[0], (cin,)),
        norm_b=rnd(ks[1], (cin,)),
        conv1_w=rnd(ks[2], (cout, cin, 3, 3)),
        conv1_b=rnd(ks[3], (cout,)),
        temb_w=rnd(ks[4], (cout, tc)),
        temb_b=rnd(ks[5], (cout,)),
        norm2_g=1.0 + rnd(ks[6], (cout,)),
        norm2_b=rnd(ks[7], (cout,)),
        conv2_w=rnd(ks[8], (cout, cout, 3, 3)),
        conv2_b=rnd(ks[9], (cout,)),
        nin_w=rnd(ks[10], (cout, cin, 1, 1)),
        nin_b=rnd(ks[11], (cout,)),
    )


def ref_forward(x, temb, p, num_groups):
    """Pure-JAX NCHW reference mirroring the PyTorch module."""
    def gn(z, gamma, beta):
        N, C, H, W = z.shape
        zr = z.reshape(N, num_groups, C // num_groups, H, W)
        mean = zr.mean(axis=(2, 3, 4), keepdims=True)
        var = zr.var(axis=(2, 3, 4), keepdims=True)
        zn = ((zr - mean) * lax.rsqrt(var + 1e-5)).reshape(N, C, H, W)
        return zn * gamma.reshape(1, C, 1, 1) + beta.reshape(1, C, 1, 1)

    def conv(z, w, b, pad):
        y = lax.conv_general_dilated(z, w, (1, 1), ((pad, pad), (pad, pad)),
                                     dimension_numbers=("NCHW", "OIHW", "NCHW"))
        return y + b.reshape(1, -1, 1, 1)

    cin = x.shape[1]
    cout = p["conv1_w"].shape[0]
    h = conv(jax.nn.relu(gn(x, p["norm_g"], p["norm_b"])), p["conv1_w"], p["conv1_b"], 1)
    proj = jax.nn.relu(temb) @ p["temb_w"].T + p["temb_b"]
    h = h + proj[:, :, None, None]
    h = jax.nn.relu(gn(h, p["norm2_g"], p["norm2_b"]))
    h = conv(h, p["conv2_w"], p["conv2_b"], 1)
    sc = conv(x, p["nin_w"], p["nin_b"], 0) if cin != cout else x
    return h + sc


# ---------------------------------- main ------------------------------------

if __name__ == "__main__":
    key = jax.random.PRNGKey(0)
    k_x, k_t, k_p = jax.random.split(key, 3)

    N, cin, cout, H, W = 2, 4, 8, 16, 16
    num_groups, tc = 2, 32

    x = jax.random.normal(k_x, (N, cin, H, W), jnp.float32)
    temb = jax.random.normal(k_t, (N, tc), jnp.float32)
    params = init_params(k_p, cin, cout, tc)

    out = jax.block_until_ready(wide_resnet_block(x, temb, params, num_groups))
    ref = jax.block_until_ready(ref_forward(x, temb, params, num_groups))

    assert out.shape == (N, cout, H, W), out.shape
    # bf16 MXU operands (f32 accumulation) -> bf16-level tolerance.
    if not jnp.allclose(out, ref, atol=5e-2, rtol=5e-2):
        max_err = float(jnp.max(jnp.abs(out - ref)))
        raise AssertionError(f"kernel/reference mismatch, max abs err={max_err}")

    print("KERNEL_OK")
</pallas_src>

<mosaic_0001>
module attributes {stable_mosaic.version = 11 : i64} {
  func.func @k(%arg0: memref<8x128xf32, #tpu.memory_space<vmem>>, %arg1: memref<8x128xf32, #tpu.memory_space<vmem>>) attributes {dimension_semantics = [], scalar_prefetch = 0 : i64, scratch_operands = 0 : i64, tpu.core_type = #tpu.core_type<tc>} {
    %c0 = arith.constant 0 : index
    %c0_0 = arith.constant 0 : index
    %0 = vector.load %arg0[%c0, %c0_0] : memref<8x128xf32, #tpu.memory_space<vmem>>, vector<8x128xf32>
    %c1_i32 = arith.constant 1 : i32
    %1 = tpu.dynamic_rotate %0 by %c1_i32 dim 1 : vector<8x128xf32>, i32 -> vector<8x128xf32>
    %c0_1 = arith.constant 0 : index
    %c0_2 = arith.constant 0 : index
    %2 = vector.load %arg1[%c0_1, %c0_2] : memref<8x128xf32, #tpu.memory_space<vmem>>, vector<8x128xf32>
    tpu.vector_store %arg1[%c0_1, %c0_2], %1 {strides = array<i32>} : memref<8x128xf32, #tpu.memory_space<vmem>>, vector<8x128xf32>,
    return
  }
}

</mosaic_0001>

<llo_original>
// kernel: tpu_custom_call.1
$region0: #{tpu_custom_call.1}
  #allocation0 [shape = 'u32[]', space=smem, size = 0x4, offset = 0x4, fixed_abs, tag = 'smem constant byte address 0x4 - core index']
  #allocation1 [shape = 'u32[144,128]{1,0:T(1,128)}', space=vmem, size = 0x12000, scoped, tag = 'internal scratch']
  %s0 = inlined_call_operand.hbm [shape: f32[8,128], index: 0, kind: input, shape index: {}]
  %s1 = inlined_call_operand.hbm [shape: f32[8,128], index: 1, kind: output, shape index: {}]
  %s2 = sld [smem:[#allocation0]]
  $region18: #{tpu_custom_call.1} parent=0
    _
  %s4 = ssub.s32 1, %s2
  %s5 = scalar_select 0, %s4, %s2
  $region1: #{tpu_custom_call.1} parent=0
    #allocation2 [shape = 'u8[4096]{0}', space=vmem, size = 0x1000, scoped, tag = 'input window, operand 0, single buffered']
    #allocation3 [shape = 's32[1]{0}', space=sflag, size = 0x4, scoped, tag = 'scoped memory for tpu_custom_call.1']
    #allocation4 [shape = 's32[1]{0}', space=sflag, size = 0x4, scoped, tag = 'scoped memory for tpu_custom_call.1']
    #allocation5 [shape = 'u8[4096]{0}', space=vmem, size = 0x1000, scoped, tag = 'output window, operand 0, single buffered']
    %6 = vsyncpa [#allocation3], 0
    %7 = vsyncpa [#allocation4], 0
    // Predicated region
    $region2: #{tpu_custom_call.1} parent=1 // pred_check
      _
    $region3: #{tpu_custom_call.1} parent=1 // pred_check_branch
      %9 = sbr.rel (0) target = $region5
    $region4: #{tpu_custom_call.1} parent=1 // pred_region
      %s11 = ssub.s32 128, 128
      %12 = vsyncadd [#allocation3], %s11
      %s14 = sshll.u32 [#allocation2], 4
      %s15 = int_to_ptr.vmem [resolvable:$true] %s14
      %17 = dma.hbm_to_vmem [thread:$0]  %s0, 128, %s15, [#allocation3]
    $region5: #{tpu_custom_call.1} parent=1 // pred_fallthru
      _
    // Predicated region
    $region6: #{tpu_custom_call.1} parent=1 // pred_check
      _
    $region7: #{tpu_custom_call.1} parent=1 // pred_check_branch
      %19 = sbr.rel (0) target = $region9
    $region8: #{tpu_custom_call.1} parent=1 // pred_region
      %20 = dma.done [#allocation3], 128
    $region9: #{tpu_custom_call.1} parent=1 // pred_fallthru
      _
    %v21 = vld [vmem:[#allocation2] sm:$0xff]
    %22 = vrot.lane.b32.xlu0 %v21, 1
    %v23 = vpop.permute.xlu0 %22
    %24 = vst [vmem:[#allocation5] sm:$0xff] %v23
    // Predicated region
    $region10: #{tpu_custom_call.1} parent=1 // pred_check
      _
    $region11: #{tpu_custom_call.1} parent=1 // pred_check_branch
      %26 = sbr.rel (0) target = $region13
    $region12: #{tpu_custom_call.1} parent=1 // pred_region
      %s28 = ssub.s32 128, 128
      %29 = vsyncadd [#allocation4], %s28
      %s31 = sshll.u32 [#allocation5], 4
      %s32 = int_to_ptr.vmem [resolvable:$true] %s31
      %34 = dma.vmem_to_hbm [thread:$0]  %s32, 128, %s1, [#allocation4]
    $region13: #{tpu_custom_call.1} parent=1 // pred_fallthru
      _
    // Predicated region
    $region14: #{tpu_custom_call.1} parent=1 // pred_check
      _
    $region15: #{tpu_custom_call.1} parent=1 // pred_check_branch
      %36 = sbr.rel (0) target = $region17
    $region16: #{tpu_custom_call.1} parent=1 // pred_region
      %37 = dma.done [#allocation4], 128
    $region17: #{tpu_custom_call.1} parent=1 // pred_fallthru
      _
    %38 = vsyncpa [#allocation3], 1
    %39 = vsyncpa [#allocation4], 1

</llo_original>
